<compile_context>
chip_gen: v7x
topology: tpu7x:2x2x1
jax: 0.10.0
libtpu: 0.0.40
codegen_flags: <defaults>
</compile_context>

<pallas_src>
import numpy as np

import jax
import jax.numpy as jnp
from jax import lax
from jax.experimental import pallas as pl
from jax.experimental.pallas import tpu as pltpu

# ----------------------------- sizes ---------------------------------------
N, CIN, H, W = 2, 3, 16, 16   # small, consistent with an RGB dehazing net
CMID = 8                      # hidden channels of the synthetic fusion_net
COUT = CIN
KH = KW = 3                   # 3x3 convs, padding=1 ("same")


# ----------------------------- kernel --------------------------------------
def fusion_residual_kernel(x_ref, w1_ref, b1_ref, w2_ref, b2_ref, o_ref):
    """conv3x3(CIN->CMID) + ReLU + conv3x3(CMID->COUT) + bias + residual add.

    One grid step == one batch image, in a lane-dense [H, W*C] layout.

    x_ref  : [H, W*CIN]           image rows (w-major, c-minor on lanes)
    w1_ref : [3, W*CIN,  W*CMID]  band matrices (one per ky tap, kx+pad folded in)
    b1_ref : [1, W*CMID]          bias tiled over W
    w2_ref : [3, W*CMID, W*COUT]
    b2_ref : [1, W*COUT]
    o_ref  : [H, W*COUT]
    """
    x = x_ref[...]                                     # [H, W*CIN], f32
    h = x.shape[0]
    ridx = lax.broadcasted_iota(jnp.int32, (h, 1), 0)  # image-row index (2-D iota)

    def conv3x3_band(inp, w_ref, bias):
        # One MXU matmul per ky tap; kx taps + W-direction zero padding are
        # already encoded in the block-Toeplitz band matrices.
        p_top = jnp.dot(inp, w_ref[0], preferred_element_type=jnp.float32)
        p_mid = jnp.dot(inp, w_ref[1], preferred_element_type=jnp.float32)
        p_bot = jnp.dot(inp, w_ref[2], preferred_element_type=jnp.float32)
        # ky = 0 contributes from row r-1  -> shift down one row, zero row 0.
        from_above = jnp.where(ridx == 0, 0.0,
                               pltpu.roll(p_top, shift=1, axis=0))
        # ky = 2 contributes from row r+1  -> shift up one row, zero last row.
        from_below = jnp.where(ridx == h - 1, 0.0,
                               pltpu.roll(p_bot, shift=h - 1, axis=0))
        return from_above + p_mid + from_below + bias

    feat = jnp.maximum(conv3x3_band(x, w1_ref, b1_ref[...]), 0.0)  # [H, W*CMID]
    # final_net.forward: return fusion_net(hazy) + hazy  (residual, same buffer)
    o_ref[...] = conv3x3_band(feat, w2_ref, b2_ref[...]) + x


# ------------------- one-time parameter folding (wrapper glue) --------------
def fold_params(w1, b1, w2, b2):
    """Fold 3x3 HWIO conv weights into per-ky block-Toeplitz band matrices.

    B[ky, wi*Cin + ci, wo*Cout + co] = w[ky, wi-wo+1, ci, co] if |wi-wo| <= 1
    else 0 — this encodes both the kx taps and the zero "same" padding in W.
    """
    wi = np.arange(W)[None, :, None]
    wo = np.arange(W)[None, None, :]
    dk = np.arange(KW)[:, None, None]
    sel = jnp.asarray((wi == wo + dk - 1).astype(np.float32))      # [KW, W, W]

    B1 = jnp.einsum("xio,yxcm->yicom", sel, w1).reshape(KH, W * CIN, W * CMID)
    B2 = jnp.einsum("xio,yxcm->yicom", sel, w2).reshape(KH, W * CMID, W * COUT)
    b1row = jnp.tile(b1.reshape(1, CMID), (1, W))                  # [1, W*CMID]
    b2row = jnp.tile(b2.reshape(1, COUT), (1, W))                  # [1, W*COUT]
    return B1, b1row, B2, b2row


# ----------------------------- wrapper --------------------------------------
def final_net_forward(hazy_nchw, folded_params):
    """hazy_nchw: [N, CIN, H, W] float32 (PyTorch layout). Returns same layout."""
    B1, b1row, B2, b2row = folded_params
    # NCHW -> lane-dense [N*H, W*CIN] slab (layout glue only, done by XLA).
    x2d = jnp.transpose(hazy_nchw, (0, 2, 3, 1)).reshape(N * H, W * CIN)

    grid_spec = pltpu.PrefetchScalarGridSpec(
        num_scalar_prefetch=0,
        grid=(N,),
        in_specs=[
            pl.BlockSpec((H, W * CIN), lambda n: (n, 0)),
            pl.BlockSpec((KH, W * CIN, W * CMID), lambda n: (0, 0, 0)),
            pl.BlockSpec((1, W * CMID), lambda n: (0, 0)),
            pl.BlockSpec((KH, W * CMID, W * COUT), lambda n: (0, 0, 0)),
            pl.BlockSpec((1, W * COUT), lambda n: (0, 0)),
        ],
        out_specs=pl.BlockSpec((H, W * COUT), lambda n: (n, 0)),
    )

    out2d = pl.pallas_call(
        fusion_residual_kernel,
        out_shape=jax.ShapeDtypeStruct((N * H, W * COUT), jnp.float32),
        grid_spec=grid_spec,
        compiler_params=pltpu.CompilerParams(
            dimension_semantics=("parallel",)),
    )(x2d, B1, b1row, B2, b2row)

    return jnp.transpose(out2d.reshape(N, H, W, COUT), (0, 3, 1, 2))


# ----------------------------- reference (pure JAX) --------------------------
def final_net_reference(hazy_nchw, params):
    w1, b1, w2, b2 = params
    x = jnp.transpose(hazy_nchw, (0, 2, 3, 1))
    dn = ("NHWC", "HWIO", "NHWC")
    h1 = lax.conv_general_dilated(x, w1, (1, 1), "SAME", dimension_numbers=dn)
    h1 = jnp.maximum(h1 + b1.reshape(1, 1, 1, -1), 0.0)
    h2 = lax.conv_general_dilated(h1, w2, (1, 1), "SAME", dimension_numbers=dn)
    out = h2 + b2.reshape(1, 1, 1, -1) + x
    return jnp.transpose(out, (0, 3, 1, 2))


# ----------------------------- main ------------------------------------------
if __name__ == "__main__":
    key = jax.random.PRNGKey(0)
    k_in, k_w1, k_b1, k_w2, k_b2 = jax.random.split(key, 5)

    hazy = jax.random.uniform(k_in, (N, CIN, H, W), jnp.float32)  # image in [0,1)

    # Deterministic synthetic parameters (small scale, conv-style init).
    w1 = jax.random.normal(k_w1, (KH, KW, CIN, CMID), jnp.float32) * 0.1
    b1 = jax.random.normal(k_b1, (1, CMID), jnp.float32) * 0.01
    w2 = jax.random.normal(k_w2, (KH, KW, CMID, COUT), jnp.float32) * 0.1
    b2 = jax.random.normal(k_b2, (1, COUT), jnp.float32) * 0.01
    params = (w1, b1, w2, b2)
    folded = fold_params(*params)   # one-time weight folding (offline prep)

    out = jax.block_until_ready(final_net_forward(hazy, folded))
    ref = jax.block_until_ready(final_net_reference(hazy, params))

    assert out.shape == hazy.shape and out.dtype == jnp.float32
    assert jnp.allclose(out, ref, atol=1e-4, rtol=1e-4), "mismatch vs JAX reference"

    print("KERNEL_OK")
</pallas_src>

<mosaic_0001>
module attributes {stable_mosaic.version = 11 : i64} {
  func.func @fusion_residual_kernel(%arg0: i32, %arg1: memref<16x48xf32, #tpu.memory_space<vmem>>, %arg2: memref<3x48x128xf32, #tpu.memory_space<vmem>>, %arg3: memref<1x128xf32, #tpu.memory_space<vmem>>, %arg4: memref<3x128x48xf32, #tpu.memory_space<vmem>>, %arg5: memref<1x48xf32, #tpu.memory_space<vmem>>, %arg6: memref<16x48xf32, #tpu.memory_space<vmem>>) attributes {dimension_semantics = [#tpu.dimension_semantics<parallel>], iteration_bounds = array<i64: 2>, scalar_prefetch = 0 : i64, scratch_operands = 0 : i64, tpu.core_type = #tpu.core_type<tc>, window_params = [{transform_indices = @transform_0, window_bounds = array<i64: 16, 48>}, {pipeline_mode = #tpu.pipeline_mode<synchronous>, transform_indices = @transform_1, window_bounds = array<i64: 3, 48, 128>}, {pipeline_mode = #tpu.pipeline_mode<synchronous>, transform_indices = @transform_2, window_bounds = array<i64: 1, 128>}, {pipeline_mode = #tpu.pipeline_mode<synchronous>, transform_indices = @transform_3, window_bounds = array<i64: 3, 128, 48>}, {pipeline_mode = #tpu.pipeline_mode<synchronous>, transform_indices = @transform_4, window_bounds = array<i64: 1, 48>}, {transform_indices = @transform_5, window_bounds = array<i64: 16, 48>}]} {
    %c0 = arith.constant 0 : index
    %c0_0 = arith.constant 0 : index
    %0 = vector.load %arg1[%c0, %c0_0] : memref<16x48xf32, #tpu.memory_space<vmem>>, vector<16x48xf32>
    %1 = tpu.iota {dimensions = array<i32: 0>} : vector<16x1xi32>
    %c0_1 = arith.constant 0 : index
    %c0_2 = arith.constant 0 : index
    %2 = vector.load %arg3[%c0_1, %c0_2] : memref<1x128xf32, #tpu.memory_space<vmem>>, vector<1x128xf32>
    %c0_3 = arith.constant 0 : index
    %c0_4 = arith.constant 0 : index
    %c0_5 = arith.constant 0 : index
    %3 = vector.load %arg2[%c0_3, %c0_4, %c0_5] : memref<3x48x128xf32, #tpu.memory_space<vmem>>, vector<1x48x128xf32>
    %4 = vector.shape_cast %3 : vector<1x48x128xf32> to vector<48x128xf32>
    %cst = arith.constant dense<0.000000e+00> : vector<16x128xf32>
    %5 = tpu.matmul %0, %4, %cst {dimension_numbers = #tpu.dot_dimension_numbers<[1], [0], [0], [1], [0, 0, 1, 1], [], []>} : vector<16x48xf32>, vector<48x128xf32>, vector<16x128xf32> -> vector<16x128xf32>
    %c1 = arith.constant 1 : index
    %c0_6 = arith.constant 0 : index
    %c0_7 = arith.constant 0 : index
    %6 = vector.load %arg2[%c1, %c0_6, %c0_7] : memref<3x48x128xf32, #tpu.memory_space<vmem>>, vector<1x48x128xf32>
    %7 = vector.shape_cast %6 : vector<1x48x128xf32> to vector<48x128xf32>
    %cst_8 = arith.constant dense<0.000000e+00> : vector<16x128xf32>
    %8 = tpu.matmul %0, %7, %cst_8 {dimension_numbers = #tpu.dot_dimension_numbers<[1], [0], [0], [1], [0, 0, 1, 1], [], []>} : vector<16x48xf32>, vector<48x128xf32>, vector<16x128xf32> -> vector<16x128xf32>
    %c2 = arith.constant 2 : index
    %c0_9 = arith.constant 0 : index
    %c0_10 = arith.constant 0 : index
    %9 = vector.load %arg2[%c2, %c0_9, %c0_10] : memref<3x48x128xf32, #tpu.memory_space<vmem>>, vector<1x48x128xf32>
    %10 = vector.shape_cast %9 : vector<1x48x128xf32> to vector<48x128xf32>
    %cst_11 = arith.constant dense<0.000000e+00> : vector<16x128xf32>
    %11 = tpu.matmul %0, %10, %cst_11 {dimension_numbers = #tpu.dot_dimension_numbers<[1], [0], [0], [1], [0, 0, 1, 1], [], []>} : vector<16x48xf32>, vector<48x128xf32>, vector<16x128xf32> -> vector<16x128xf32>
    %c0_i32 = arith.constant 0 : i32
    %12 = vector.broadcast %c0_i32 : i32 to vector<16x1xi32>
    %13 = arith.cmpi eq, %1, %12 : vector<16x1xi32>
    %c1_i32 = arith.constant 1 : i32
    %14 = tpu.dynamic_rotate %5 by %c1_i32 dim 0 : vector<16x128xf32>, i32 -> vector<16x128xf32>
    %cst_12 = arith.constant 0.000000e+00 : f32
    %15 = vector.shape_cast %13 : vector<16x1xi1> to vector<16x1xi1>
    %16 = vector.broadcast %15 : vector<16x1xi1> to vector<16x128xi1>
    %17 = vector.broadcast %cst_12 : f32 to vector<16x128xf32>
    %18 = arith.select %16, %17, %14 : vector<16x128xi1>, vector<16x128xf32>
    %c15_i32 = arith.constant 15 : i32
    %19 = vector.broadcast %c15_i32 : i32 to vector<16x1xi32>
    %20 = arith.cmpi eq, %1, %19 : vector<16x1xi32>
    %c15_i32_13 = arith.constant 15 : i32
    %21 = tpu.dynamic_rotate %11 by %c15_i32_13 dim 0 : vector<16x128xf32>, i32 -> vector<16x128xf32>
    %cst_14 = arith.constant 0.000000e+00 : f32
    %22 = vector.shape_cast %20 : vector<16x1xi1> to vector<16x1xi1>
    %23 = vector.broadcast %22 : vector<16x1xi1> to vector<16x128xi1>
    %24 = vector.broadcast %cst_14 : f32 to vector<16x128xf32>
    %25 = arith.select %23, %24, %21 : vector<16x128xi1>, vector<16x128xf32>
    %26 = arith.addf %18, %8 : vector<16x128xf32>
    %27 = arith.addf %26, %25 : vector<16x128xf32>
    %28 = vector.broadcast %2 : vector<1x128xf32> to vector<16x128xf32>
    %29 = arith.addf %27, %28 : vector<16x128xf32>
    %cst_15 = arith.constant 0.000000e+00 : f32
    %30 = vector.broadcast %cst_15 : f32 to vector<16x128xf32>
    %31 = arith.maximumf %29, %30 : vector<16x128xf32>
    %c0_16 = arith.constant 0 : index
    %c0_17 = arith.constant 0 : index
    %32 = vector.load %arg5[%c0_16, %c0_17] : memref<1x48xf32, #tpu.memory_space<vmem>>, vector<1x48xf32>
    %c0_18 = arith.constant 0 : index
    %c0_19 = arith.constant 0 : index
    %c0_20 = arith.constant 0 : index
    %33 = vector.load %arg4[%c0_18, %c0_19, %c0_20] : memref<3x128x48xf32, #tpu.memory_space<vmem>>, vector<1x128x48xf32>
    %34 = vector.shape_cast %33 : vector<1x128x48xf32> to vector<128x48xf32>
    %cst_21 = arith.constant dense<0.000000e+00> : vector<16x48xf32>
    %35 = tpu.matmul %31, %34, %cst_21 {dimension_numbers = #tpu.dot_dimension_numbers<[1], [0], [0], [1], [0, 0, 1, 1], [], []>} : vector<16x128xf32>, vector<128x48xf32>, vector<16x48xf32> -> vector<16x48xf32>
    %c1_22 = arith.constant 1 : index
    %c0_23 = arith.constant 0 : index
    %c0_24 = arith.constant 0 : index
    %36 = vector.load %arg4[%c1_22, %c0_23, %c0_24] : memref<3x128x48xf32, #tpu.memory_space<vmem>>, vector<1x128x48xf32>
    %37 = vector.shape_cast %36 : vector<1x128x48xf32> to vector<128x48xf32>
    %cst_25 = arith.constant dense<0.000000e+00> : vector<16x48xf32>
    %38 = tpu.matmul %31, %37, %cst_25 {dimension_numbers = #tpu.dot_dimension_numbers<[1], [0], [0], [1], [0, 0, 1, 1], [], []>} : vector<16x128xf32>, vector<128x48xf32>, vector<16x48xf32> -> vector<16x48xf32>
    %c2_26 = arith.constant 2 : index
    %c0_27 = arith.constant 0 : index
    %c0_28 = arith.constant 0 : index
    %39 = vector.load %arg4[%c2_26, %c0_27, %c0_28] : memref<3x128x48xf32, #tpu.memory_space<vmem>>, vector<1x128x48xf32>
    %40 = vector.shape_cast %39 : vector<1x128x48xf32> to vector<128x48xf32>
    %cst_29 = arith.constant dense<0.000000e+00> : vector<16x48xf32>
    %41 = tpu.matmul %31, %40, %cst_29 {dimension_numbers = #tpu.dot_dimension_numbers<[1], [0], [0], [1], [0, 0, 1, 1], [], []>} : vector<16x128xf32>, vector<128x48xf32>, vector<16x48xf32> -> vector<16x48xf32>
    %c0_i32_30 = arith.constant 0 : i32
    %42 = vector.broadcast %c0_i32_30 : i32 to vector<16x1xi32>
    %43 = arith.cmpi eq, %1, %42 : vector<16x1xi32>
    %c1_i32_31 = arith.constant 1 : i32
    %44 = tpu.dynamic_rotate %35 by %c1_i32_31 dim 0 : vector<16x48xf32>, i32 -> vector<16x48xf32>
    %cst_32 = arith.constant 0.000000e+00 : f32
    %45 = vector.shape_cast %43 : vector<16x1xi1> to vector<16x1xi1>
    %46 = vector.broadcast %45 : vector<16x1xi1> to vector<16x48xi1>
    %47 = vector.broadcast %cst_32 : f32 to vector<16x48xf32>
    %48 = arith.select %46, %47, %44 : vector<16x48xi1>, vector<16x48xf32>
    %c15_i32_33 = arith.constant 15 : i32
    %49 = vector.broadcast %c15_i32_33 : i32 to vector<16x1xi32>
    %50 = arith.cmpi eq, %1, %49 : vector<16x1xi32>
    %c15_i32_34 = arith.constant 15 : i32
    %51 = tpu.dynamic_rotate %41 by %c15_i32_34 dim 0 : vector<16x48xf32>, i32 -> vector<16x48xf32>
    %cst_35 = arith.constant 0.000000e+00 : f32
    %52 = vector.shape_cast %50 : vector<16x1xi1> to vector<16x1xi1>
    %53 = vector.broadcast %52 : vector<16x1xi1> to vector<16x48xi1>
    %54 = vector.broadcast %cst_35 : f32 to vector<16x48xf32>
    %55 = arith.select %53, %54, %51 : vector<16x48xi1>, vector<16x48xf32>
    %56 = arith.addf %48, %38 : vector<16x48xf32>
    %57 = arith.addf %56, %55 : vector<16x48xf32>
    %58 = vector.broadcast %32 : vector<1x48xf32> to vector<16x48xf32>
    %59 = arith.addf %57, %58 : vector<16x48xf32>
    %60 = arith.addf %59, %0 : vector<16x48xf32>
    %c0_36 = arith.constant 0 : index
    %c0_37 = arith.constant 0 : index
    %61 = vector.load %arg6[%c0_36, %c0_37] : memref<16x48xf32, #tpu.memory_space<vmem>>, vector<16x48xf32>
    tpu.vector_store %arg6[%c0_36, %c0_37], %60 {strides = array<i32>} : memref<16x48xf32, #tpu.memory_space<vmem>>, vector<16x48xf32>,
    return
  }
  func.func @transform_0(%arg0: i32) -> (i32, i32) {
    %c0_i32 = arith.constant 0 : i32
    %c0_i32_0 = arith.constant 0 : i32
    return %arg0, %c0_i32 : i32, i32
  }
  func.func @transform_1(%arg0: i32) -> (i32, i32, i32) {
    %c0_i32 = arith.constant 0 : i32
    %c0_i32_0 = arith.constant 0 : i32
    %c0_i32_1 = arith.constant 0 : i32
    %c0_i32_2 = arith.constant 0 : i32
    return %c0_i32, %c0_i32_0, %c0_i32_1 : i32, i32, i32
  }
  func.func @transform_2(%arg0: i32) -> (i32, i32) {
    %c0_i32 = arith.constant 0 : i32
    %c0_i32_0 = arith.constant 0 : i32
    %c0_i32_1 = arith.constant 0 : i32
    return %c0_i32, %c0_i32_0 : i32, i32
  }
  func.func @transform_3(%arg0: i32) -> (i32, i32, i32) {
    %c0_i32 = arith.constant 0 : i32
    %c0_i32_0 = arith.constant 0 : i32
    %c0_i32_1 = arith.constant 0 : i32
    %c0_i32_2 = arith.constant 0 : i32
    return %c0_i32, %c0_i32_0, %c0_i32_1 : i32, i32, i32
  }
  func.func @transform_4(%arg0: i32) -> (i32, i32) {
    %c0_i32 = arith.constant 0 : i32
    %c0_i32_0 = arith.constant 0 : i32
    %c0_i32_1 = arith.constant 0 : i32
    return %c0_i32, %c0_i32_0 : i32, i32
  }
  func.func @transform_5(%arg0: i32) -> (i32, i32) {
    %c0_i32 = arith.constant 0 : i32
    %c0_i32_0 = arith.constant 0 : i32
    return %arg0, %c0_i32 : i32, i32
  }
}

</mosaic_0001>

<llo_original>
// kernel: tpu_custom_call.1
$region0: #{tpu_custom_call.1}
  #allocation0 [shape = 'u32[]', space=smem, size = 0x4, offset = 0x4, fixed_abs, tag = 'smem constant byte address 0x4 - core index']
  #allocation1 [shape = 'u32[144,128]{1,0:T(1,128)}', space=vmem, size = 0x12000, scoped, tag = 'internal scratch']
  %s0 = inlined_call_operand.vmem [shape: f32[32,48], index: 0, kind: input, shape index: {}]
  %s1 = inlined_call_operand.vmem [shape: f32[3,48,128], index: 1, kind: input, shape index: {}]
  %s2 = inlined_call_operand.vmem [shape: f32[1,128], index: 2, kind: input, shape index: {}]
  %s3 = inlined_call_operand.vmem [shape: f32[3,128,48], index: 3, kind: input, shape index: {}]
  %s4 = inlined_call_operand.vmem [shape: f32[1,48], index: 4, kind: input, shape index: {}]
  %s5 = inlined_call_operand.hbm [shape: f32[32,48], index: 5, kind: output, shape index: {}]
  %s6 = sld [smem:[#allocation0]]
  $region53: #{tpu_custom_call.1} parent=0
    _
  %s8 = ssub.s32 1, %s6
  %s9 = scalar_select 0, %s8, %s6
  $region1: #{tpu_custom_call.1} parent=0
    #allocation2 [shape = 'u8[16384]{0}', space=vmem, size = 0x4000, scoped, tag = 'output window, operand 0']
    #allocation3 [shape = 's32[2]{0}', space=sflag, size = 0x8, scoped, tag = 'scoped memory for tpu_custom_call.1']
    %10 = vsyncpa [#allocation3], 0
    %s11 = scalar_lea.sflag [#allocation3], 1
    %12 = vsyncpa %s11, 0
    loop: start=0, step=1, limit=4
    $region2: #{tpu_custom_call.1} parent=1 // loop_pre_header
      _
    $region3: #{tpu_custom_call.1} parent=1 // loop_header
      %s14 = sphi 0, %s18
      %p15 = scmp.ge.s32.totalorder %s14, 4
      %s24 = sphi 0, %s26
      %s27 = sphi 0, %s24
      %s28 = sphi 0, %s27
      %s44 = sphi 0, %s28
      %s48 = sphi 0, %s48
      %s50 = sphi 0, %s48
      %s51 = sphi 0, %s50
      %s65 = sphi 0, %s51
      %s69 = sphi 0, %s69
      %s71 = sphi 0, %s69
      %s72 = sphi 0, %s71
      %s86 = sphi 0, %s72
      %s90 = sphi 0, %s90
      %s92 = sphi 0, %s90
      %s93 = sphi 0, %s92
      %s107 = sphi 0, %s93
      %s111 = sphi 0, %s111
      %s113 = sphi 0, %s111
      %s114 = sphi 0, %s113
      %s128 = sphi 0, %s114
      %s134 = sphi 0, %s136
      %s137 = sphi 0, %s134
      %s138 = sphi 0, %s137
      %s154 = sphi 0, %s138
    $region4: #{tpu_custom_call.1} parent=1 // loop_header_branch
      %17 = sbr.rel (%p15) target = $region8
    $region5: #{tpu_custom_call.1} parent=1 // loop_body
      %s19 = ssub.s32 %s14, 1
      %s20 = ssub.s32 %s14, 2
      %s21 = sadd.s32 %s14, 1
      %s22 = ssub.s32 %s14, %s21
      %p23 = scmp.eq.s32.totalorder %s22, 0
      %s25 = sadd.s32 %s24, 1
      %s26 = scalar_select %p23, %s24, %s25
      %p29 = pneg %p23
      %p30 = scmp.eq.s32.totalorder %s14, 1
      %p31 = por %p29, %p30
      %p32 = scmp.ne.s32.totalorder %s24, %s27
      %p33 = scmp.eq.s32.totalorder %s14, 0
      %p34 = por %p32, %p33
      %p35 = scmp.ne.s32.totalorder %s24, %s27
      %p36 = scmp.eq.s32.totalorder %s19, 1
      %p37 = por %p35, %p36
      %p38 = scmp.ne.s32.totalorder %s27, %s28
      %p39 = scmp.eq.s32.totalorder %s19, 0
      %p40 = por %p38, %p39
      %p41 = scmp.ne.s32.totalorder %s27, %s28
      %p42 = scmp.eq.s32.totalorder %s20, 1
      %p43 = por %p41, %p42
      %p45 = scmp.ne.s32.totalorder %s28, %s44
      %p46 = scmp.eq.s32.totalorder %s20, 0
      %p47 = por %p45, %p46
      %s49 = sadd.s32 %s48, 1
      %p52 = scmp.eq.s32.totalorder %s14, 1
      %p53 = scmp.ne.s32.totalorder %s48, %s50
      %p54 = scmp.eq.s32.totalorder %s14, 0
      %p55 = por %p53, %p54
      %p56 = scmp.ne.s32.totalorder %s48, %s50
      %p57 = scmp.eq.s32.totalorder %s19, 1
      %p58 = por %p56, %p57
      %p59 = scmp.ne.s32.totalorder %s50, %s51
      %p60 = scmp.eq.s32.totalorder %s19, 0
      %p61 = por %p59, %p60
      %p62 = scmp.ne.s32.totalorder %s50, %s51
      %p63 = scmp.eq.s32.totalorder %s20, 1
      %p64 = por %p62, %p63
      %p66 = scmp.ne.s32.totalorder %s51, %s65
      %p67 = scmp.eq.s32.totalorder %s20, 0
      %p68 = por %p66, %p67
      %s70 = sadd.s32 %s69, 1
      %p73 = scmp.eq.s32.totalorder %s14, 1
      %p74 = scmp.ne.s32.totalorder %s69, %s71
      %p75 = scmp.eq.s32.totalorder %s14, 0
      %p76 = por %p74, %p75
      %p77 = scmp.ne.s32.totalorder %s69, %s71
      %p78 = scmp.eq.s32.totalorder %s19, 1
      %p79 = por %p77, %p78
      %p80 = scmp.ne.s32.totalorder %s71, %s72
      %p81 = scmp.eq.s32.totalorder %s19, 0
      %p82 = por %p80, %p81
      %p83 = scmp.ne.s32.totalorder %s71, %s72
      %p84 = scmp.eq.s32.totalorder %s20, 1
      %p85 = por %p83, %p84
      %p87 = scmp.ne.s32.totalorder %s72, %s86
      %p88 = scmp.eq.s32.totalorder %s20, 0
      %p89 = por %p87, %p88
      %s91 = sadd.s32 %s90, 1
      %p94 = scmp.eq.s32.totalorder %s14, 1
      %p95 = scmp.ne.s32.totalorder %s90, %s92
      %p96 = scmp.eq.s32.totalorder %s14, 0
      %p97 = por %p95, %p96
      %p98 = scmp.ne.s32.totalorder %s90, %s92
      %p99 = scmp.eq.s32.totalorder %s19, 1
      %p100 = por %p98, %p99
      %p101 = scmp.ne.s32.totalorder %s92, %s93
      %p102 = scmp.eq.s32.totalorder %s19, 0
      %p103 = por %p101, %p102
      %p104 = scmp.ne.s32.totalorder %s92, %s93
      %p105 = scmp.eq.s32.totalorder %s20, 1
      %p106 = por %p104, %p105
      %p108 = scmp.ne.s32.totalorder %s93, %s107
      %p109 = scmp.eq.s32.totalorder %s20, 0
      %p110 = por %p108, %p109
      %s112 = sadd.s32 %s111, 1
      %p115 = scmp.eq.s32.totalorder %s14, 1
      %p116 = scmp.ne.s32.totalorder %s111, %s113
      %p117 = scmp.eq.s32.totalorder %s14, 0
      %p118 = por %p116, %p117
      %p119 = scmp.ne.s32.totalorder %s111, %s113
      %p120 = scmp.eq.s32.totalorder %s19, 1
      %p121 = por %p119, %p120
      %p122 = scmp.ne.s32.totalorder %s113, %s114
      %p123 = scmp.eq.s32.totalorder %s19, 0
      %p124 = por %p122, %p123
      %p125 = scmp.ne.s32.totalorder %s113, %s114
      %p126 = scmp.eq.s32.totalorder %s20, 1
      %p127 = por %p125, %p126
      %p129 = scmp.ne.s32.totalorder %s114, %s128
      %p130 = scmp.eq.s32.totalorder %s20, 0
      %p131 = por %p129, %p130
      %s132 = ssub.s32 %s14, %s21
      %p133 = scmp.eq.s32.totalorder %s132, 0
      %s135 = sadd.s32 %s134, 1
      %s136 = scalar_select %p133, %s134, %s135
      %p139 = pneg %p133
      %p140 = scmp.eq.s32.totalorder %s14, 1
      %p141 = por %p139, %p140
      %p142 = scmp.ne.s32.totalorder %s134, %s137
      %p143 = scmp.eq.s32.totalorder %s14, 0
      %p144 = por %p142, %p143
      %p145 = scmp.ne.s32.totalorder %s134, %s137
      %p146 = scmp.eq.s32.totalorder %s19, 1
      %p147 = por %p145, %p146
      %p148 = scmp.ne.s32.totalorder %s137, %s138
      %p149 = scmp.eq.s32.totalorder %s19, 0
      %p150 = por %p148, %p149
      %p151 = scmp.ne.s32.totalorder %s137, %s138
      %p152 = scmp.eq.s32.totalorder %s20, 1
      %p153 = por %p151, %p152
      %p155 = scmp.ne.s32.totalorder %s138, %s154
      %p156 = scmp.eq.s32.totalorder %s20, 0
      %p157 = por %p155, %p156
      %p158 = scmp.le.s32.totalorder 1, %s14
      %p159 = scmp.lt.s32.totalorder %s14, 3
      %p160 = pnand %p158, %p159
      %p161 = pneg %p160
      // Predicated region
      $region9: #{tpu_custom_call.1} parent=5 // pred_check
        _
      $region10: #{tpu_custom_call.1} parent=5 // pred_check_branch
        %163 = sbr.rel (%p160) target = $region12
      $region11: #{tpu_custom_call.1} parent=5 // pred_region
        %s164 = ssub.s32 %s14, 1
        // Predicated region
        $region13: #{tpu_custom_call.1} parent=11 // pred_check
          %p165 = pneg %p61
        $region14: #{tpu_custom_call.1} parent=11 // pred_check_branch
          %167 = sbr.rel (%p165) target = $region16
        $region15: #{tpu_custom_call.1} parent=11 // pred_region
          _
        $region16: #{tpu_custom_call.1} parent=11 // pred_fallthru
          _
        // Predicated region
        $region17: #{tpu_custom_call.1} parent=11 // pred_check
          %p168 = pneg %p82
        $region18: #{tpu_custom_call.1} parent=11 // pred_check_branch
          %170 = sbr.rel (%p168) target = $region20
        $region19: #{tpu_custom_call.1} parent=11 // pred_region
          _
        $region20: #{tpu_custom_call.1} parent=11 // pred_fallthru
          _
        // Predicated region
        $region21: #{tpu_custom_call.1} parent=11 // pred_check
          %p171 = pneg %p103
        $region22: #{tpu_custom_call.1} parent=11 // pred_check_branch
          %173 = sbr.rel (%p171) target = $region24
        $region23: #{tpu_custom_call.1} parent=11 // pred_region
          _
        $region24: #{tpu_custom_call.1} parent=11 // pred_fallthru
          _
        // Predicated region
        $region25: #{tpu_custom_call.1} parent=11 // pred_check
          %p174 = pneg %p124
        $region26: #{tpu_custom_call.1} parent=11 // pred_check_branch
          %176 = sbr.rel (%p174) target = $region28
        $region27: #{tpu_custom_call.1} parent=11 // pred_region
          _
        $region28: #{tpu_custom_call.1} parent=11 // pred_fallthru
          _
      $region12: #{tpu_custom_call.1} parent=5 // pred_fallthru
        _
      %p177 = scmp.lt.s32.totalorder %s14, 2
      // Predicated region
      $region29: #{tpu_custom_call.1} parent=5 // pred_check
        %p178 = pneg %p177
      $region30: #{tpu_custom_call.1} parent=5 // pred_check_branch
        %180 = sbr.rel (%p178) target = $region32
      $region31: #{tpu_custom_call.1} parent=5 // pred_region
        // Predicated region
        $region33: #{tpu_custom_call.1} parent=31 // pred_check
          %p181 = pneg %p34
        $region34: #{tpu_custom_call.1} parent=31 // pred_check_branch
          %183 = sbr.rel (%p181) target = $region36
        $region35: #{tpu_custom_call.1} parent=31 // pred_region
          %s184 = smul.u32 2, %s14
          %p185 = scmp.lt.s32.totalorder %s184, 3
          %s186 = scalar_select %p185, %s184, 3
          %s187 = smul.addr %s186, 8
          %s188 = scalar_lea.vmem %s0, %s187
          %s189 = smul.u32 2, %s14
        $region36: #{tpu_custom_call.1} parent=31 // pred_fallthru
          _
      $region32: #{tpu_custom_call.1} parent=5 // pred_fallthru
        _
      %p190 = scmp.le.s32.totalorder 1, %s14
      %p191 = scmp.lt.s32.totalorder %s14, 3
      %p192 = pnand %p190, %p191
      %p193 = pneg %p192
      // Predicated region
      $region37: #{tpu_custom_call.1} parent=5 // pred_check
        _
      $region38: #{tpu_custom_call.1} parent=5 // pred_check_branch
        %195 = sbr.rel (%p192) target = $region40
      $region39: #{tpu_custom_call.1} parent=5 // pred_region
        %s196 = ssub.s32 %s14, 1
        %s197 = smul.u32 2, %s19
        %p198 = scmp.lt.s32.totalorder %s197, 3
        %s199 = scalar_select %p198, %s197, 3
        %s200 = smul.addr %s199, 8
        %s201 = scalar_lea.vmem %s0, %s200
        %p202 = pneg %p40
        %p203 = pneg %p37
        %p204 = pneg %p61
        %p205 = pneg %p58
        %p206 = pneg %p82
        %p207 = pneg %p79
        %p208 = pneg %p103
        %p209 = pneg %p100
        %p210 = pneg %p124
        %p211 = pneg %p121
        %p212 = pneg %p150
        %p213 = pneg %p147
        %s214 = sand.u32 %s137, 1
        %s215 = scalar_lea.sflag [#allocation3], %s214
        %s216 = sand.u32 %s137, 1
        %s217 = smul.addr %s216, 16
        %s218 = scalar_lea.vmem [#allocation2], %s217
        %s219 = smul.u32 2, %s19
        %p220 = scmp.lt.s32.totalorder %s219, 3
        %s221 = scalar_select %p220, %s219, 3
        %s222 = smul.addr %s221, 8
        %s223 = scalar_lea.vmem %s0, %s222
        %s224 = smul.u32 2, %s19
        %s225 = smul.u32 2, %s19
        %v226 = vld [vmem:[%s223] sm:$0xff]
        %v227 = vld [vmem:[%s223 + $0x8] sm:$0xff]
        %v228 = vlaneseq
        %v229 = vshrl.u32 %v228, 7
        %v230 = vadd.s32 %v229, 8
        %v231 = vld [vmem:[%s2] sm:$0x1]
        %v232 = vld [vmem:[%s1] sm:$0xff]
        %v233 = vld [vmem:[%s1 + $0x8] sm:$0xff]
        %v234 = vld [vmem:[%s1 + $0x10] sm:$0xff]
        %v235 = vld [vmem:[%s1 + $0x18] sm:$0xff]
        %v236 = vld [vmem:[%s1 + $0x20] sm:$0xff]
        %v237 = vld [vmem:[%s1 + $0x28] sm:$0xff]
        %vm238 = vcmask 392192
        %v240 = vsel %vm238, %v226, 0
        %v243 = vsel %vm238, %v227, 0
        %245 = vmatprep.subr.mxu0 0.0
        %246 = vmatpush1.msra.mxu0 %v232
        %247 = vmatprep.subr.mxu0 0.0
        %248 = vmatpush1.msra.mxu0 %v233
        %249 = vmatprep.subr.mxu0 0.0
        %250 = vmatpush1.msra.mxu0 %v234
        %251 = vmatprep.subr.mxu0 0.0
        %252 = vmatpush1.msra.mxu0 %v235
        %253 = vmatprep.subr.mxu0 0.0
        %254 = vmatpush1.msra.mxu0 %v236
        %255 = vmatprep.subr.mxu0 0.0
        %256 = vmatpush1.msra.mxu0 %v237
        %257 = vmatprep.subr.mxu0 0.0
        %258 = vmatpush1.msra.mxu0 0.0
        %259 = vmatprep.subr.mxu0 0.0
        %260 = vmatpush1.msra.mxu0 0.0
        %261 = vmatprep.subr.mxu0 0.0
        %262 = vmatpush1.msra.mxu0 0.0
        %263 = vmatprep.subr.mxu0 0.0
        %264 = vmatpush1.msra.mxu0 0.0
        %265 = vmatprep.subr.mxu0 0.0
        %266 = vmatpush1.msra.mxu0 0.0
        %267 = vmatprep.subr.mxu0 0.0
        %268 = vmatpush1.msra.mxu0 0.0
        %269 = vmatprep.subr.mxu0 0.0
        %270 = vmatpush1.msra.mxu0 0.0
        %271 = vmatprep.subr.mxu0 0.0
        %272 = vmatpush1.msra.mxu0 0.0
        %273 = vmatprep.subr.mxu0 0.0
        %274 = vmatpush1.msra.mxu0 0.0
        %275 = vmatprep.subr.mxu0 0.0
        %276 = vmatpush1.msra.mxu0 0.0
        %277 = vmatprep.subr.mxu0 0.0
        %278 = vmatpush1.msra.mxu0 0.0
        %279 = vmatprep.subr.mxu0 0.0
        %280 = vmatpush1.msra.mxu0 0.0
        %281 = vmatprep.subr.mxu0 0.0
        %282 = vmatpush1.msra.mxu0 0.0
        %283 = vmatprep.subr.mxu0 0.0
        %284 = vmatpush1.msra.mxu0 0.0
        %285 = vmatprep.subr.mxu0 0.0
        %286 = vmatpush1.msra.mxu0 0.0
        %287 = vmatprep.subr.mxu0 0.0
        %288 = vmatpush1.msra.mxu0 0.0
        %289 = vmatprep.subr.mxu0 0.0
        %290 = vmatpush1.msra.mxu0 0.0
        %291 = vmatprep.subr.mxu0 0.0
        %292 = vmatpush1.msra.mxu0 0.0
        %293 = vmatprep.subr.mxu0 0.0
        %294 = vmatpush1.msra.mxu0 0.0
        %295 = vmatprep.subr.mxu0 0.0
        %296 = vmatpush1.msra.mxu0 0.0
        %297 = vmatprep.subr.mxu0 0.0
        %298 = vmatpush1.msra.mxu0 0.0
        %299 = vmatprep.subr.mxu0 0.0
        %300 = vmatpush1.msra.mxu0 0.0
        %301 = vmatprep.subr.mxu0 0.0
        %302 = vmatpush1.msra.mxu0 0.0
        %303 = vmatprep.subr.mxu0 0.0
        %304 = vmatpush1.msra.mxu0 0.0
        %305 = vmatprep.subr.mxu0 0.0
        %306 = vmatpush1.msra.mxu0 0.0
        %307 = vmatprep.subr.mxu0 0.0
        %308 = vmatpush1.msra.mxu0 0.0
        %309 = vmatprep.mubr.f32.mxu0 0.0
        %310 = vmatmul.mubr.f32.gmra.mrb[0].mxu0 %v240
        %v311 = vpop.f32.mrb[0].mxu0
        %v312 = vadd.f32 0.0, %v311
        %v313 = vpop.f32.mrb[0].mxu0
        %314 = vmatprep.mubr.f32.mxu0 0.0
        %315 = vmatmul.mubr.f32.gmra.mrb[0].mxu0 %v243
        %v316 = vpop.f32.mrb[0].mxu0
        %v317 = vadd.f32 0.0, %v316
        %v318 = vpop.f32.mrb[0].mxu0
        %319 = vdwg.mxu0
        %s320 = scalar_lea.vmem %s1, 48
        %v321 = vld [vmem:[%s320] sm:$0xff]
        %v322 = vld [vmem:[%s320 + $0x8] sm:$0xff]
        %v323 = vld [vmem:[%s320 + $0x10] sm:$0xff]
        %v324 = vld [vmem:[%s320 + $0x18] sm:$0xff]
        %v325 = vld [vmem:[%s320 + $0x20] sm:$0xff]
        %v326 = vld [vmem:[%s320 + $0x28] sm:$0xff]
        %327 = vmatprep.subr.mxu0 0.0
        %328 = vmatpush1.msra.mxu0 %v321
        %329 = vmatprep.subr.mxu0 0.0
        %330 = vmatpush1.msra.mxu0 %v322
        %331 = vmatprep.subr.mxu0 0.0
        %332 = vmatpush1.msra.mxu0 %v323
        %333 = vmatprep.subr.mxu0 0.0
        %334 = vmatpush1.msra.mxu0 %v324
        %335 = vmatprep.subr.mxu0 0.0
        %336 = vmatpush1.msra.mxu0 %v325
        %337 = vmatprep.subr.mxu0 0.0
        %338 = vmatpush1.msra.mxu0 %v326
        %339 = vmatprep.subr.mxu0 0.0
        %340 = vmatpush1.msra.mxu0 0.0
        %341 = vmatprep.subr.mxu0 0.0
        %342 = vmatpush1.msra.mxu0 0.0
        %343 = vmatprep.subr.mxu0 0.0
        %344 = vmatpush1.msra.mxu0 0.0
        %345 = vmatprep.subr.mxu0 0.0
        %346 = vmatpush1.msra.mxu0 0.0
        %347 = vmatprep.subr.mxu0 0.0
        %348 = vmatpush1.msra.mxu0 0.0
        %349 = vmatprep.subr.mxu0 0.0
        %350 = vmatpush1.msra.mxu0 0.0
        %351 = vmatprep.subr.mxu0 0.0
        %352 = vmatpush1.msra.mxu0 0.0
        %353 = vmatprep.subr.mxu0 0.0
        %354 = vmatpush1.msra.mxu0 0.0
        %355 = vmatprep.subr.mxu0 0.0
        %356 = vmatpush1.msra.mxu0 0.0
        %357 = vmatprep.subr.mxu0 0.0
        %358 = vmatpush1.msra.mxu0 0.0
        %359 = vmatprep.subr.mxu0 0.0
        %360 = vmatpush1.msra.mxu0 0.0
        %361 = vmatprep.subr.mxu0 0.0
        %362 = vmatpush1.msra.mxu0 0.0
        %363 = vmatprep.subr.mxu0 0.0
        %364 = vmatpush1.msra.mxu0 0.0
        %365 = vmatprep.subr.mxu0 0.0
        %366 = vmatpush1.msra.mxu0 0.0
        %367 = vmatprep.subr.mxu0 0.0
        %368 = vmatpush1.msra.mxu0 0.0
        %369 = vmatprep.subr.mxu0 0.0
        %370 = vmatpush1.msra.mxu0 0.0
        %371 = vmatprep.subr.mxu0 0.0
        %372 = vmatpush1.msra.mxu0 0.0
        %373 = vmatprep.subr.mxu0 0.0
        %374 = vmatpush1.msra.mxu0 0.0
        %375 = vmatprep.subr.mxu0 0.0
        %376 = vmatpush1.msra.mxu0 0.0
        %377 = vmatprep.subr.mxu0 0.0
        %378 = vmatpush1.msra.mxu0 0.0
        %379 = vmatprep.subr.mxu0 0.0
        %380 = vmatpush1.msra.mxu0 0.0
        %381 = vmatprep.subr.mxu0 0.0
        %382 = vmatpush1.msra.mxu0 0.0
        %383 = vmatprep.subr.mxu0 0.0
        %384 = vmatpush1.msra.mxu0 0.0
        %385 = vmatprep.subr.mxu0 0.0
        %386 = vmatpush1.msra.mxu0 0.0
        %387 = vmatprep.subr.mxu0 0.0
        %388 = vmatpush1.msra.mxu0 0.0
        %389 = vmatprep.subr.mxu0 0.0
        %390 = vmatpush1.msra.mxu0 0.0
        %391 = vmatprep.mubr.f32.mxu0 0.0
        %392 = vmatmul.mubr.f32.gmra.mrb[0].mxu0 %v240
        %v393 = vpop.f32.mrb[0].mxu0
        %v394 = vadd.f32 0.0, %v393
        %v395 = vpop.f32.mrb[0].mxu0
        %396 = vmatprep.mubr.f32.mxu0 0.0
        %397 = vmatmul.mubr.f32.gmra.mrb[0].mxu0 %v243
        %v398 = vpop.f32.mrb[0].mxu0
        %v399 = vadd.f32 0.0, %v398
        %v400 = vpop.f32.mrb[0].mxu0
        %401 = vdwg.mxu0
        %s402 = scalar_lea.vmem %s1, 96
        %v403 = vld [vmem:[%s402] sm:$0xff]
        %v404 = vld [vmem:[%s402 + $0x8] sm:$0xff]
        %v405 = vld [vmem:[%s402 + $0x10] sm:$0xff]
        %v406 = vld [vmem:[%s402 + $0x18] sm:$0xff]
        %v407 = vld [vmem:[%s402 + $0x20] sm:$0xff]
        %v408 = vld [vmem:[%s402 + $0x28] sm:$0xff]
        %409 = vmatprep.subr.mxu0 0.0
        %410 = vmatpush1.msra.mxu0 %v403
        %411 = vmatprep.subr.mxu0 0.0
        %412 = vmatpush1.msra.mxu0 %v404
        %413 = vmatprep.subr.mxu0 0.0
        %414 = vmatpush1.msra.mxu0 %v405
        %415 = vmatprep.subr.mxu0 0.0
        %416 = vmatpush1.msra.mxu0 %v406
        %417 = vmatprep.subr.mxu0 0.0
        %418 = vmatpush1.msra.mxu0 %v407
        %419 = vmatprep.subr.mxu0 0.0
        %420 = vmatpush1.msra.mxu0 %v408
        %421 = vmatprep.subr.mxu0 0.0
        %422 = vmatpush1.msra.mxu0 0.0
        %423 = vmatprep.subr.mxu0 0.0
        %424 = vmatpush1.msra.mxu0 0.0
        %425 = vmatprep.subr.mxu0 0.0
        %426 = vmatpush1.msra.mxu0 0.0
        %427 = vmatprep.subr.mxu0 0.0
        %428 = vmatpush1.msra.mxu0 0.0
        %429 = vmatprep.subr.mxu0 0.0
        %430 = vmatpush1.msra.mxu0 0.0
        %431 = vmatprep.subr.mxu0 0.0
        %432 = vmatpush1.msra.mxu0 0.0
        %433 = vmatprep.subr.mxu0 0.0
        %434 = vmatpush1.msra.mxu0 0.0
        %435 = vmatprep.subr.mxu0 0.0
        %436 = vmatpush1.msra.mxu0 0.0
        %437 = vmatprep.subr.mxu0 0.0
        %438 = vmatpush1.msra.mxu0 0.0
        %439 = vmatprep.subr.mxu0 0.0
        %440 = vmatpush1.msra.mxu0 0.0
        %441 = vmatprep.subr.mxu0 0.0
        %442 = vmatpush1.msra.mxu0 0.0
        %443 = vmatprep.subr.mxu0 0.0
        %444 = vmatpush1.msra.mxu0 0.0
        %445 = vmatprep.subr.mxu0 0.0
        %446 = vmatpush1.msra.mxu0 0.0
        %447 = vmatprep.subr.mxu0 0.0
        %448 = vmatpush1.msra.mxu0 0.0
        %449 = vmatprep.subr.mxu0 0.0
        %450 = vmatpush1.msra.mxu0 0.0
        %451 = vmatprep.subr.mxu0 0.0
        %452 = vmatpush1.msra.mxu0 0.0
        %453 = vmatprep.subr.mxu0 0.0
        %454 = vmatpush1.msra.mxu0 0.0
        %455 = vmatprep.subr.mxu0 0.0
        %456 = vmatpush1.msra.mxu0 0.0
        %457 = vmatprep.subr.mxu0 0.0
        %458 = vmatpush1.msra.mxu0 0.0
        %459 = vmatprep.subr.mxu0 0.0
        %460 = vmatpush1.msra.mxu0 0.0
        %461 = vmatprep.subr.mxu0 0.0
        %462 = vmatpush1.msra.mxu0 0.0
        %463 = vmatprep.subr.mxu0 0.0
        %464 = vmatpush1.msra.mxu0 0.0
        %465 = vmatprep.subr.mxu0 0.0
        %466 = vmatpush1.msra.mxu0 0.0
        %467 = vmatprep.subr.mxu0 0.0
        %468 = vmatpush1.msra.mxu0 0.0
        %469 = vmatprep.subr.mxu0 0.0
        %470 = vmatpush1.msra.mxu0 0.0
        %471 = vmatprep.subr.mxu0 0.0
        %472 = vmatpush1.msra.mxu0 0.0
        %473 = vmatprep.mubr.f32.mxu0 0.0
        %474 = vmatmul.mubr.f32.gmra.mrb[0].mxu0 %v240
        %v475 = vpop.f32.mrb[0].mxu0
        %v476 = vadd.f32 0.0, %v475
        %v477 = vpop.f32.mrb[0].mxu0
        %478 = vmatprep.mubr.f32.mxu0 0.0
        %479 = vmatmul.mubr.f32.gmra.mrb[0].mxu0 %v243
        %v480 = vpop.f32.mrb[0].mxu0
        %v481 = vadd.f32 0.0, %v480
        %v482 = vpop.f32.mrb[0].mxu0
        %483 = vdwg.mxu0
        %vm484 = vcmp.eq.s32.totalorder %v229, 0
        %vm485 = vcmp.eq.s32.totalorder %v230, 0
        %v486 = vrot.slane %v312, 7
        %v487 = vrot.slane %v317, 7
        %vm488 = vcmp.lt.s32.totalorder %v229, 1
        %v489 = vsel %vm488, %v486, %v487
        %v490 = vsel %vm488, %v487, %v486
        %v491 = vsel %vm484, 1, 0
        %v492 = vsel %vm485, 1, 0
        %vm493 = vcmp.eq.s32.totalorder %v491, 1
        %vm494 = vcmp.eq.s32.totalorder %v492, 1
        %v495 = vsel %vm493, 0.0, %v490
        %v496 = vsel %vm494, 0.0, %v489
        %vm497 = vcmp.eq.s32.totalorder %v229, 15
        %vm498 = vcmp.eq.s32.totalorder %v230, 15
        %v499 = vrot.slane %v476, 1
        %v500 = vrot.slane %v481, 1
        %vm501 = vcmp.lt.s32.totalorder %v229, 7
        %v502 = vsel %vm501, %v499, %v500
        %v503 = vsel %vm501, %v500, %v499
        %v504 = vsel %vm497, 1, 0
        %v505 = vsel %vm498, 1, 0
        %vm506 = vcmp.eq.s32.totalorder %v504, 1
        %vm507 = vcmp.eq.s32.totalorder %v505, 1
        %v508 = vsel %vm506, 0.0, %v502
        %v509 = vsel %vm507, 0.0, %v503
        %v510 = vadd.f32 %v495, %v394
        %v511 = vadd.f32 %v496, %v399
        %v512 = vadd.f32 %v510, %v508
        %v513 = vadd.f32 %v511, %v509
        %v515 = vlaneseq
        %v516 = vshrl.u32 %v515, 7
        %v517 = vsub.s32 0, %v516
        %v518 = vrot.slane %v231, %v517
        %v520 = vadd.f32 %v512, %v518
        %v521 = vadd.f32 %v513, %v518
        %v522 = vmax.f32 %v520, 0.0
        %v523 = vmax.f32 %v521, 0.0
        %v524 = vld [vmem:[%s4] sm:$0x1]
        %v525 = vld [vmem:[%s3] sm:$0xff]
        %v526 = vld [vmem:[%s3 + $0x8] sm:$0xff]
        %v527 = vld [vmem:[%s3 + $0x10] sm:$0xff]
        %v528 = vld [vmem:[%s3 + $0x18] sm:$0xff]
        %v529 = vld [vmem:[%s3 + $0x20] sm:$0xff]
        %v530 = vld [vmem:[%s3 + $0x28] sm:$0xff]
        %v531 = vld [vmem:[%s3 + $0x30] sm:$0xff]
        %v532 = vld [vmem:[%s3 + $0x38] sm:$0xff]
        %v533 = vld [vmem:[%s3 + $0x40] sm:$0xff]
        %v534 = vld [vmem:[%s3 + $0x48] sm:$0xff]
        %v535 = vld [vmem:[%s3 + $0x50] sm:$0xff]
        %v536 = vld [vmem:[%s3 + $0x58] sm:$0xff]
        %v537 = vld [vmem:[%s3 + $0x60] sm:$0xff]
        %v538 = vld [vmem:[%s3 + $0x68] sm:$0xff]
        %v539 = vld [vmem:[%s3 + $0x70] sm:$0xff]
        %v540 = vld [vmem:[%s3 + $0x78] sm:$0xff]
        %541 = vmatprep.subr.mxu0 0.0
        %542 = vmatpush1.msra.mxu0 %v525
        %543 = vmatprep.subr.mxu0 0.0
        %544 = vmatpush1.msra.mxu0 %v526
        %545 = vmatprep.subr.mxu0 0.0
        %546 = vmatpush1.msra.mxu0 %v527
        %547 = vmatprep.subr.mxu0 0.0
        %548 = vmatpush1.msra.mxu0 %v528
        %549 = vmatprep.subr.mxu0 0.0
        %550 = vmatpush1.msra.mxu0 %v529
        %551 = vmatprep.subr.mxu0 0.0
        %552 = vmatpush1.msra.mxu0 %v530
        %553 = vmatprep.subr.mxu0 0.0
        %554 = vmatpush1.msra.mxu0 %v531
        %555 = vmatprep.subr.mxu0 0.0
        %556 = vmatpush1.msra.mxu0 %v532
        %557 = vmatprep.subr.mxu0 0.0
        %558 = vmatpush1.msra.mxu0 %v533
        %559 = vmatprep.subr.mxu0 0.0
        %560 = vmatpush1.msra.mxu0 %v534
        %561 = vmatprep.subr.mxu0 0.0
        %562 = vmatpush1.msra.mxu0 %v535
        %563 = vmatprep.subr.mxu0 0.0
        %564 = vmatpush1.msra.mxu0 %v536
        %565 = vmatprep.subr.mxu0 0.0
        %566 = vmatpush1.msra.mxu0 %v537
        %567 = vmatprep.subr.mxu0 0.0
        %568 = vmatpush1.msra.mxu0 %v538
        %569 = vmatprep.subr.mxu0 0.0
        %570 = vmatpush1.msra.mxu0 %v539
        %571 = vmatprep.subr.mxu0 0.0
        %572 = vmatpush1.msra.mxu0 %v540
        %573 = vmatprep.subr.mxu0 0.0
        %574 = vmatpush1.msra.mxu0 0.0
        %575 = vmatprep.subr.mxu0 0.0
        %576 = vmatpush1.msra.mxu0 0.0
        %577 = vmatprep.subr.mxu0 0.0
        %578 = vmatpush1.msra.mxu0 0.0
        %579 = vmatprep.subr.mxu0 0.0
        %580 = vmatpush1.msra.mxu0 0.0
        %581 = vmatprep.subr.mxu0 0.0
        %582 = vmatpush1.msra.mxu0 0.0
        %583 = vmatprep.subr.mxu0 0.0
        %584 = vmatpush1.msra.mxu0 0.0
        %585 = vmatprep.subr.mxu0 0.0
        %586 = vmatpush1.msra.mxu0 0.0
        %587 = vmatprep.subr.mxu0 0.0
        %588 = vmatpush1.msra.mxu0 0.0
        %589 = vmatprep.subr.mxu0 0.0
        %590 = vmatpush1.msra.mxu0 0.0
        %591 = vmatprep.subr.mxu0 0.0
        %592 = vmatpush1.msra.mxu0 0.0
        %593 = vmatprep.subr.mxu0 0.0
        %594 = vmatpush1.msra.mxu0 0.0
        %595 = vmatprep.subr.mxu0 0.0
        %596 = vmatpush1.msra.mxu0 0.0
        %597 = vmatprep.subr.mxu0 0.0
        %598 = vmatpush1.msra.mxu0 0.0
        %599 = vmatprep.subr.mxu0 0.0
        %600 = vmatpush1.msra.mxu0 0.0
        %601 = vmatprep.subr.mxu0 0.0
        %602 = vmatpush1.msra.mxu0 0.0
        %603 = vmatprep.subr.mxu0 0.0
        %604 = vmatpush1.msra.mxu0 0.0
        %605 = vmatprep.mubr.f32.mxu0 0.0
        %606 = vmatmul.mubr.f32.gmra.mrb[0].mxu0 %v522
        %v607 = vpop.f32.mrb[0].mxu0
        %v608 = vadd.f32 0.0, %v607
        %v609 = vpop.f32.mrb[0].mxu0
        %610 = vmatprep.mubr.f32.mxu0 0.0
        %611 = vmatmul.mubr.f32.gmra.mrb[0].mxu0 %v523
        %v612 = vpop.f32.mrb[0].mxu0
        %v613 = vadd.f32 0.0, %v612
        %v614 = vpop.f32.mrb[0].mxu0
        %615 = vdwg.mxu0
        %s616 = scalar_lea.vmem %s3, 128
        %v617 = vld [vmem:[%s616] sm:$0xff]
        %v618 = vld [vmem:[%s616 + $0x8] sm:$0xff]
        %v619 = vld [vmem:[%s616 + $0x10] sm:$0xff]
        %v620 = vld [vmem:[%s616 + $0x18] sm:$0xff]
        %v621 = vld [vmem:[%s616 + $0x20] sm:$0xff]
        %v622 = vld [vmem:[%s616 + $0x28] sm:$0xff]
        %v623 = vld [vmem:[%s616 + $0x30] sm:$0xff]
        %v624 = vld [vmem:[%s616 + $0x38] sm:$0xff]
        %v625 = vld [vmem:[%s616 + $0x40] sm:$0xff]
        %v626 = vld [vmem:[%s616 + $0x48] sm:$0xff]
        %v627 = vld [vmem:[%s616 + $0x50] sm:$0xff]
        %v628 = vld [vmem:[%s616 + $0x58] sm:$0xff]
        %v629 = vld [vmem:[%s616 + $0x60] sm:$0xff]
        %v630 = vld [vmem:[%s616 + $0x68] sm:$0xff]
        %v631 = vld [vmem:[%s616 + $0x70] sm:$0xff]
        %v632 = vld [vmem:[%s616 + $0x78] sm:$0xff]
        %633 = vmatprep.subr.mxu0 0.0
        %634 = vmatpush1.msra.mxu0 %v617
        %635 = vmatprep.subr.mxu0 0.0
        %636 = vmatpush1.msra.mxu0 %v618
        %637 = vmatprep.subr.mxu0 0.0
        %638 = vmatpush1.msra.mxu0 %v619
        %639 = vmatprep.subr.mxu0 0.0
        %640 = vmatpush1.msra.mxu0 %v620
        %641 = vmatprep.subr.mxu0 0.0
        %642 = vmatpush1.msra.mxu0 %v621
        %643 = vmatprep.subr.mxu0 0.0
        %644 = vmatpush1.msra.mxu0 %v622
        %645 = vmatprep.subr.mxu0 0.0
        %646 = vmatpush1.msra.mxu0 %v623
        %647 = vmatprep.subr.mxu0 0.0
        %648 = vmatpush1.msra.mxu0 %v624
        %649 = vmatprep.subr.mxu0 0.0
        %650 = vmatpush1.msra.mxu0 %v625
        %651 = vmatprep.subr.mxu0 0.0
        %652 = vmatpush1.msra.mxu0 %v626
        %653 = vmatprep.subr.mxu0 0.0
        %654 = vmatpush1.msra.mxu0 %v627
        %655 = vmatprep.subr.mxu0 0.0
        %656 = vmatpush1.msra.mxu0 %v628
        %657 = vmatprep.subr.mxu0 0.0
        %658 = vmatpush1.msra.mxu0 %v629
        %659 = vmatprep.subr.mxu0 0.0
        %660 = vmatpush1.msra.mxu0 %v630
        %661 = vmatprep.subr.mxu0 0.0
        %662 = vmatpush1.msra.mxu0 %v631
        %663 = vmatprep.subr.mxu0 0.0
        %664 = vmatpush1.msra.mxu0 %v632
        %665 = vmatprep.subr.mxu0 0.0
        %666 = vmatpush1.msra.mxu0 0.0
        %667 = vmatprep.subr.mxu0 0.0
        %668 = vmatpush1.msra.mxu0 0.0
        %669 = vmatprep.subr.mxu0 0.0
        %670 = vmatpush1.msra.mxu0 0.0
        %671 = vmatprep.subr.mxu0 0.0
        %672 = vmatpush1.msra.mxu0 0.0
        %673 = vmatprep.subr.mxu0 0.0
        %674 = vmatpush1.msra.mxu0 0.0
        %675 = vmatprep.subr.mxu0 0.0
        %676 = vmatpush1.msra.mxu0 0.0
        %677 = vmatprep.subr.mxu0 0.0
        %678 = vmatpush1.msra.mxu0 0.0
        %679 = vmatprep.subr.mxu0 0.0
        %680 = vmatpush1.msra.mxu0 0.0
        %681 = vmatprep.subr.mxu0 0.0
        %682 = vmatpush1.msra.mxu0 0.0
        %683 = vmatprep.subr.mxu0 0.0
        %684 = vmatpush1.msra.mxu0 0.0
        %685 = vmatprep.subr.mxu0 0.0
        %686 = vmatpush1.msra.mxu0 0.0
        %687 = vmatprep.subr.mxu0 0.0
        %688 = vmatpush1.msra.mxu0 0.0
        %689 = vmatprep.subr.mxu0 0.0
        %690 = vmatpush1.msra.mxu0 0.0
        %691 = vmatprep.subr.mxu0 0.0
        %692 = vmatpush1.msra.mxu0 0.0
        %693 = vmatprep.subr.mxu0 0.0
        %694 = vmatpush1.msra.mxu0 0.0
        %695 = vmatprep.subr.mxu0 0.0
        %696 = vmatpush1.msra.mxu0 0.0
        %697 = vmatprep.mubr.f32.mxu0 0.0
        %698 = vmatmul.mubr.f32.gmra.mrb[0].mxu0 %v522
        %v699 = vpop.f32.mrb[0].mxu0
        %v700 = vadd.f32 0.0, %v699
        %v701 = vpop.f32.mrb[0].mxu0
        %702 = vmatprep.mubr.f32.mxu0 0.0
        %703 = vmatmul.mubr.f32.gmra.mrb[0].mxu0 %v523
        %v704 = vpop.f32.mrb[0].mxu0
        %v705 = vadd.f32 0.0, %v704
        %v706 = vpop.f32.mrb[0].mxu0
        %707 = vdwg.mxu0
        %s708 = scalar_lea.vmem %s3, 256
        %v709 = vld [vmem:[%s708] sm:$0xff]
        %v710 = vld [vmem:[%s708 + $0x8] sm:$0xff]
        %v711 = vld [vmem:[%s708 + $0x10] sm:$0xff]
        %v712 = vld [vmem:[%s708 + $0x18] sm:$0xff]
        %v713 = vld [vmem:[%s708 + $0x20] sm:$0xff]
        %v714 = vld [vmem:[%s708 + $0x28] sm:$0xff]
        %v715 = vld [vmem:[%s708 + $0x30] sm:$0xff]
        %v716 = vld [vmem:[%s708 + $0x38] sm:$0xff]
        %v717 = vld [vmem:[%s708 + $0x40] sm:$0xff]
        %v718 = vld [vmem:[%s708 + $0x48] sm:$0xff]
        %v719 = vld [vmem:[%s708 + $0x50] sm:$0xff]
        %v720 = vld [vmem:[%s708 + $0x58] sm:$0xff]
        %v721 = vld [vmem:[%s708 + $0x60] sm:$0xff]
        %v722 = vld [vmem:[%s708 + $0x68] sm:$0xff]
        %v723 = vld [vmem:[%s708 + $0x70] sm:$0xff]
        %v724 = vld [vmem:[%s708 + $0x78] sm:$0xff]
        %725 = vmatprep.subr.mxu0 0.0
        %726 = vmatpush1.msra.mxu0 %v709
        %727 = vmatprep.subr.mxu0 0.0
        %728 = vmatpush1.msra.mxu0 %v710
        %729 = vmatprep.subr.mxu0 0.0
        %730 = vmatpush1.msra.mxu0 %v711
        %731 = vmatprep.subr.mxu0 0.0
        %732 = vmatpush1.msra.mxu0 %v712
        %733 = vmatprep.subr.mxu0 0.0
        %734 = vmatpush1.msra.mxu0 %v713
        %735 = vmatprep.subr.mxu0 0.0
        %736 = vmatpush1.msra.mxu0 %v714
        %737 = vmatprep.subr.mxu0 0.0
        %738 = vmatpush1.msra.mxu0 %v715
        %739 = vmatprep.subr.mxu0 0.0
        %740 = vmatpush1.msra.mxu0 %v716
        %741 = vmatprep.subr.mxu0 0.0
        %742 = vmatpush1.msra.mxu0 %v717
        %743 = vmatprep.subr.mxu0 0.0
        %744 = vmatpush1.msra.mxu0 %v718
        %745 = vmatprep.subr.mxu0 0.0
        %746 = vmatpush1.msra.mxu0 %v719
        %747 = vmatprep.subr.mxu0 0.0
        %748 = vmatpush1.msra.mxu0 %v720
        %749 = vmatprep.subr.mxu0 0.0
        %750 = vmatpush1.msra.mxu0 %v721
        %751 = vmatprep.subr.mxu0 0.0
        %752 = vmatpush1.msra.mxu0 %v722
        %753 = vmatprep.subr.mxu0 0.0
        %754 = vmatpush1.msra.mxu0 %v723
        %755 = vmatprep.subr.mxu0 0.0
        %756 = vmatpush1.msra.mxu0 %v724
        %757 = vmatprep.subr.mxu0 0.0
        %758 = vmatpush1.msra.mxu0 0.0
        %759 = vmatprep.subr.mxu0 0.0
        %760 = vmatpush1.msra.mxu0 0.0
        %761 = vmatprep.subr.mxu0 0.0
        %762 = vmatpush1.msra.mxu0 0.0
        %763 = vmatprep.subr.mxu0 0.0
        %764 = vmatpush1.msra.mxu0 0.0
        %765 = vmatprep.subr.mxu0 0.0
        %766 = vmatpush1.msra.mxu0 0.0
        %767 = vmatprep.subr.mxu0 0.0
        %768 = vmatpush1.msra.mxu0 0.0
        %769 = vmatprep.subr.mxu0 0.0
        %770 = vmatpush1.msra.mxu0 0.0
        %771 = vmatprep.subr.mxu0 0.0
        %772 = vmatpush1.msra.mxu0 0.0
        %773 = vmatprep.subr.mxu0 0.0
        %774 = vmatpush1.msra.mxu0 0.0
        %775 = vmatprep.subr.mxu0 0.0
        %776 = vmatpush1.msra.mxu0 0.0
        %777 = vmatprep.subr.mxu0 0.0
        %778 = vmatpush1.msra.mxu0 0.0
        %779 = vmatprep.subr.mxu0 0.0
        %780 = vmatpush1.msra.mxu0 0.0
        %781 = vmatprep.subr.mxu0 0.0
        %782 = vmatpush1.msra.mxu0 0.0
        %783 = vmatprep.subr.mxu0 0.0
        %784 = vmatpush1.msra.mxu0 0.0
        %785 = vmatprep.subr.mxu0 0.0
        %786 = vmatpush1.msra.mxu0 0.0
        %787 = vmatprep.subr.mxu0 0.0
        %788 = vmatpush1.msra.mxu0 0.0
        %789 = vmatprep.mubr.f32.mxu0 0.0
        %790 = vmatmul.mubr.f32.gmra.mrb[0].mxu0 %v522
        %v791 = vpop.f32.mrb[0].mxu0
        %v792 = vadd.f32 0.0, %v791
        %v793 = vpop.f32.mrb[0].mxu0
        %794 = vmatprep.mubr.f32.mxu0 0.0
        %795 = vmatmul.mubr.f32.gmra.mrb[0].mxu0 %v523
        %v796 = vpop.f32.mrb[0].mxu0
        %v797 = vadd.f32 0.0, %v796
        %v798 = vpop.f32.mrb[0].mxu0
        %799 = vdwg.mxu0
        %v800 = vrot.slane %v608, 7
        %v801 = vrot.slane %v613, 7
        %v802 = vsel %vm488, %v800, %v801
        %v803 = vsel %vm488, %v801, %v800
        %v804 = vsel %vm493, 0.0, %v803
        %v805 = vsel %vm494, 0.0, %v802
        %v806 = vrot.slane %v792, 1
        %v807 = vrot.slane %v797, 1
        %v808 = vsel %vm501, %v806, %v807
        %v809 = vsel %vm501, %v807, %v806
        %v810 = vsel %vm506, 0.0, %v808
        %v811 = vsel %vm507, 0.0, %v809
        %v812 = vadd.f32 %v804, %v700
        %v813 = vadd.f32 %v805, %v705
        %v814 = vadd.f32 %v812, %v810
        %v815 = vadd.f32 %v813, %v811
        %v817 = vlaneseq
        %v818 = vshrl.u32 %v817, 7
        %v819 = vsub.s32 0, %v818
        %v820 = vrot.slane %v524, %v819
        %v822 = vadd.f32 %v814, %v820
        %v823 = vadd.f32 %v815, %v820
        %v824 = vadd.f32 %v822, %v226
        %v825 = vadd.f32 %v823, %v227
        %826 = vst.msk [vmem:[%s218] sm:$0xff] %vm238, %v824
        %827 = vst.msk [vmem:[%s218 + $0x8] sm:$0xff] %vm238, %v825
        %s828 = sand.u32 %s137, 1
        %s829 = scalar_lea.sflag [#allocation3], %s828
        %s830 = sand.u32 %s137, 1
        %s831 = smul.addr %s830, 16
        %s832 = scalar_lea.vmem [#allocation2], %s831
        // Predicated region
        $region41: #{tpu_custom_call.1} parent=39 // pred_check
          %p833 = pneg %p147
        $region42: #{tpu_custom_call.1} parent=39 // pred_check_branch
          %835 = sbr.rel (%p833) target = $region44
        $region43: #{tpu_custom_call.1} parent=39 // pred_region
          %s836 = smul.u32 2, %s19
          %s838 = ssub.s32 256, 256
          %839 = vsyncadd %s829, %s838
          %s840 = smul.addr %s836, 128
          %s841 = scalar_lea.hbm %s5, %s840
          %s842 = sshll.u32 %s832, 4
          %s843 = int_to_ptr.vmem [resolvable:$true] %s842
          %848 = dma.vmem_to_hbm [thread:$0]  %s843, 256, %s841, %s829, 128, 128, 8
        $region44: #{tpu_custom_call.1} parent=39 // pred_fallthru
          _
      $region40: #{tpu_custom_call.1} parent=5 // pred_fallthru
        _
      %p849 = scmp.le.s32.totalorder 2, %s14
      // Predicated region
      $region45: #{tpu_custom_call.1} parent=5 // pred_check
        %p850 = pneg %p849
      $region46: #{tpu_custom_call.1} parent=5 // pred_check_branch
        %852 = sbr.rel (%p850) target = $region48
      $region47: #{tpu_custom_call.1} parent=5 // pred_region
        %s853 = ssub.s32 %s14, 2
        // Predicated region
        $region49: #{tpu_custom_call.1} parent=47 // pred_check
          %p854 = pneg %p153
        $region50: #{tpu_custom_call.1} parent=47 // pred_check_branch
          %856 = sbr.rel (%p854) target = $region52
        $region51: #{tpu_custom_call.1} parent=47 // pred_region
          %s857 = sand.u32 %s138, 1
          %s858 = scalar_lea.sflag [#allocation3], %s857
          %s859 = sand.u32 %s138, 1
          %s860 = smul.addr %s859, 16
          %s861 = scalar_lea.vmem [#allocation2], %s860
          %862 = dma.done %s858, 256
        $region52: #{tpu_custom_call.1} parent=47 // pred_fallthru
          _
      $region48: #{tpu_custom_call.1} parent=5 // pred_fallthru
        _
    $region6: #{tpu_custom_call.1} parent=1 // loop_footer
      %s18 = sadd.s32 1, %s14
    $region7: #{tpu_custom_call.1} parent=1 // loop_footer_branch
      %13 = sbr.rel target = $region3
    $region8: #{tpu_custom_call.1} parent=1 // loop_exit
      _
    %863 = vsyncpa [#allocation3], 1
    %s864 = scalar_lea.sflag [#allocation3], 1
    %865 = vsyncpa %s864, 1

</llo_original>
